<compile_context>
chip_gen: v7x
topology: tpu7x:2x2x1
jax: 0.10.0
libtpu: 0.0.40
codegen_flags: <defaults>
</compile_context>

<pallas_src>
import functools

import jax
import jax.numpy as jnp
from jax.experimental import pallas as pl
from jax.experimental.pallas import tpu as pltpu

LATENT_SIZE = 64
HIDDEN_SIZE = 256
IMAGE_SIZE = 28 * 28          # 784 = 6*128 + 16  (ragged on the lane axis)
OUT_PAD = 7 * 128             # 896, lane-dense padded output width
TB_MAX = 512                  # batch tile: safe for v7x's 64 MiB VMEM, good on v5e/v6e


def _round_up(x, m):
    return (x + m - 1) // m * m


def generator_kernel(z_ref, w1_ref, b1_ref, w2_ref, b2_ref, w3_ref, b3_ref,
                     out_ref):
    """Fused 3-layer MLP on one batch tile. Weights are resident bf16 tiles."""
    # Layer 1: Linear(latent -> hidden) + ReLU.  bf16 x bf16 -> f32 on the MXU.
    z = z_ref[...].astype(jnp.bfloat16)
    h1 = jnp.dot(z, w1_ref[...], preferred_element_type=jnp.float32)
    h1 = jnp.maximum(h1 + b1_ref[...], 0.0)

    # Layer 2: Linear(hidden -> hidden) + ReLU.
    h2 = jnp.dot(h1.astype(jnp.bfloat16), w2_ref[...],
                 preferred_element_type=jnp.float32)
    h2 = jnp.maximum(h2 + b2_ref[...], 0.0)

    # Layer 3: Linear(hidden -> image_padded) + Tanh (tanh runs on the EUP).
    h3 = jnp.dot(h2.astype(jnp.bfloat16), w3_ref[...],
                 preferred_element_type=jnp.float32)
    out_ref[...] = jnp.tanh(h3 + b3_ref[...]).astype(out_ref.dtype)


def prepare_params(params):
    """Cast weights to bf16 (native MXU dtype) and lane-pad layer 3 to 896."""
    w1, b1, w2, b2, w3, b3 = params
    w3p = jnp.pad(w3, ((0, 0), (0, OUT_PAD - IMAGE_SIZE)))
    b3p = jnp.pad(b3, ((0, 0), (0, OUT_PAD - IMAGE_SIZE)))
    return (w1.astype(jnp.bfloat16), b1.astype(jnp.float32),
            w2.astype(jnp.bfloat16), b2.astype(jnp.float32),
            w3p.astype(jnp.bfloat16), b3p.astype(jnp.float32))


@functools.partial(jax.jit, static_argnames=())
def generator_forward(z, prepared_params):
    """z: [B, LATENT_SIZE] f32 -> [B, IMAGE_SIZE] f32."""
    w1, b1, w2, b2, w3, b3 = prepared_params
    B = z.shape[0]

    # Batch tile: multiple of 8 sublanes, capped so double-buffered output
    # tiles fit comfortably in scoped VMEM on every generation (incl. v7x).
    tb = min(TB_MAX, _round_up(B, 8))
    Bp = _round_up(B, tb)
    if Bp != B:
        z = jnp.pad(z, ((0, Bp - B), (0, 0)))
    grid = (Bp // tb,)

    flops = 2 * Bp * (LATENT_SIZE * HIDDEN_SIZE
                      + HIDDEN_SIZE * HIDDEN_SIZE
                      + HIDDEN_SIZE * OUT_PAD)
    weight_bytes = 2 * (LATENT_SIZE * HIDDEN_SIZE
                        + HIDDEN_SIZE * HIDDEN_SIZE
                        + HIDDEN_SIZE * OUT_PAD)
    bias_bytes = 4 * (HIDDEN_SIZE + HIDDEN_SIZE + OUT_PAD)
    io_bytes = 4 * Bp * (LATENT_SIZE + OUT_PAD)
    cost = pl.CostEstimate(flops=flops,
                           transcendentals=Bp * OUT_PAD,
                           bytes_accessed=weight_bytes + bias_bytes + io_bytes)

    out_padded = pl.pallas_call(
        generator_kernel,
        out_shape=jax.ShapeDtypeStruct((Bp, OUT_PAD), jnp.float32),
        grid=grid,
        in_specs=[
            # Batch-tiled input: double-buffered DMA behind compute.
            pl.BlockSpec((tb, LATENT_SIZE), lambda i: (i, 0)),
            # Weights / biases: constant index_map -> DMA'd once, stay resident.
            pl.BlockSpec((LATENT_SIZE, HIDDEN_SIZE), lambda i: (0, 0)),
            pl.BlockSpec((1, HIDDEN_SIZE), lambda i: (0, 0)),
            pl.BlockSpec((HIDDEN_SIZE, HIDDEN_SIZE), lambda i: (0, 0)),
            pl.BlockSpec((1, HIDDEN_SIZE), lambda i: (0, 0)),
            pl.BlockSpec((HIDDEN_SIZE, OUT_PAD), lambda i: (0, 0)),
            pl.BlockSpec((1, OUT_PAD), lambda i: (0, 0)),
        ],
        out_specs=pl.BlockSpec((tb, OUT_PAD), lambda i: (i, 0)),
        compiler_params=pltpu.CompilerParams(
            dimension_semantics=("parallel",)),
        cost_estimate=cost,
    )(z, w1, b1, w2, b2, w3, b3)

    return out_padded[:B, :IMAGE_SIZE]


def init_params(key):
    """Deterministic PyTorch-style (Kaiming-uniform-ish) init for each Linear."""
    def linear_init(k, fan_in, fan_out):
        kw, kb = jax.random.split(k)
        bound = 1.0 / jnp.sqrt(fan_in)
        # Stored as [in, out] (already transposed vs. torch's [out, in]).
        w = jax.random.uniform(kw, (fan_in, fan_out), jnp.float32, -bound, bound)
        b = jax.random.uniform(kb, (1, fan_out), jnp.float32, -bound, bound)
        return w, b

    k1, k2, k3 = jax.random.split(key, 3)
    w1, b1 = linear_init(k1, LATENT_SIZE, HIDDEN_SIZE)
    w2, b2 = linear_init(k2, HIDDEN_SIZE, HIDDEN_SIZE)
    w3, b3 = linear_init(k3, HIDDEN_SIZE, IMAGE_SIZE)
    return (w1, b1, w2, b2, w3, b3)


def reference_forward(z, prepared_params):
    """Pure-JAX reference following the same bf16-weight / f32-accumulate path."""
    w1, b1, w2, b2, w3, b3 = prepared_params
    h1 = jnp.dot(z.astype(jnp.bfloat16), w1,
                 preferred_element_type=jnp.float32)
    h1 = jnp.maximum(h1 + b1, 0.0)
    h2 = jnp.dot(h1.astype(jnp.bfloat16), w2,
                 preferred_element_type=jnp.float32)
    h2 = jnp.maximum(h2 + b2, 0.0)
    h3 = jnp.dot(h2.astype(jnp.bfloat16), w3,
                 preferred_element_type=jnp.float32)
    return jnp.tanh(h3 + b3)[:, :IMAGE_SIZE]


if __name__ == "__main__":
    key = jax.random.PRNGKey(0)
    kp, kz = jax.random.split(key)

    params = init_params(kp)
    prepared = prepare_params(params)

    batch = 8
    z = jax.random.normal(kz, (batch, LATENT_SIZE), dtype=jnp.float32)

    out = generator_forward(z, prepared)
    out = jax.block_until_ready(out)

    ref = reference_forward(z, prepared)
    assert out.shape == (batch, IMAGE_SIZE)
    assert jnp.allclose(out, ref, atol=1e-2, rtol=1e-2), "mismatch vs reference"

    print("KERNEL_OK")
</pallas_src>

<mosaic_0001>
module attributes {stable_mosaic.version = 11 : i64} {
  func.func @generator_kernel(%arg0: i32, %arg1: memref<8x64xf32, #tpu.memory_space<vmem>>, %arg2: memref<64x256xbf16, #tpu.memory_space<vmem>>, %arg3: memref<1x256xf32, #tpu.memory_space<vmem>>, %arg4: memref<256x256xbf16, #tpu.memory_space<vmem>>, %arg5: memref<1x256xf32, #tpu.memory_space<vmem>>, %arg6: memref<256x896xbf16, #tpu.memory_space<vmem>>, %arg7: memref<1x896xf32, #tpu.memory_space<vmem>>, %arg8: memref<8x896xf32, #tpu.memory_space<vmem>>) attributes {dimension_semantics = [#tpu.dimension_semantics<parallel>], iteration_bounds = array<i64: 1>, scalar_prefetch = 0 : i64, scratch_operands = 0 : i64, tpu.core_type = #tpu.core_type<tc>, window_params = [{transform_indices = @transform_0, window_bounds = array<i64: 8, 64>}, {pipeline_mode = #tpu.pipeline_mode<synchronous>, transform_indices = @transform_1, window_bounds = array<i64: 64, 256>}, {pipeline_mode = #tpu.pipeline_mode<synchronous>, transform_indices = @transform_2, window_bounds = array<i64: 1, 256>}, {pipeline_mode = #tpu.pipeline_mode<synchronous>, transform_indices = @transform_3, window_bounds = array<i64: 256, 256>}, {pipeline_mode = #tpu.pipeline_mode<synchronous>, transform_indices = @transform_4, window_bounds = array<i64: 1, 256>}, {pipeline_mode = #tpu.pipeline_mode<synchronous>, transform_indices = @transform_5, window_bounds = array<i64: 256, 896>}, {pipeline_mode = #tpu.pipeline_mode<synchronous>, transform_indices = @transform_6, window_bounds = array<i64: 1, 896>}, {transform_indices = @transform_7, window_bounds = array<i64: 8, 896>}]} {
    %c0 = arith.constant 0 : index
    %c0_0 = arith.constant 0 : index
    %0 = vector.load %arg1[%c0, %c0_0] : memref<8x64xf32, #tpu.memory_space<vmem>>, vector<8x64xf32>
    %1 = arith.truncf %0 : vector<8x64xf32> to vector<8x64xbf16>
    %c0_1 = arith.constant 0 : index
    %c0_2 = arith.constant 0 : index
    %2 = vector.load %arg2[%c0_1, %c0_2] : memref<64x256xbf16, #tpu.memory_space<vmem>>, vector<64x256xbf16>
    %cst = arith.constant dense<0.000000e+00> : vector<8x256xf32>
    %3 = tpu.matmul %1, %2, %cst {dimension_numbers = #tpu.dot_dimension_numbers<[1], [0], [0], [1], [0, 0, 1, 1], [], []>} : vector<8x64xbf16>, vector<64x256xbf16>, vector<8x256xf32> -> vector<8x256xf32>
    %c0_3 = arith.constant 0 : index
    %c0_4 = arith.constant 0 : index
    %4 = vector.load %arg3[%c0_3, %c0_4] : memref<1x256xf32, #tpu.memory_space<vmem>>, vector<1x256xf32>
    %5 = vector.broadcast %4 : vector<1x256xf32> to vector<8x256xf32>
    %6 = arith.addf %3, %5 : vector<8x256xf32>
    %cst_5 = arith.constant 0.000000e+00 : f32
    %7 = vector.broadcast %cst_5 : f32 to vector<8x256xf32>
    %8 = arith.maximumf %6, %7 : vector<8x256xf32>
    %9 = arith.truncf %8 : vector<8x256xf32> to vector<8x256xbf16>
    %c0_6 = arith.constant 0 : index
    %c0_7 = arith.constant 0 : index
    %10 = vector.load %arg4[%c0_6, %c0_7] : memref<256x256xbf16, #tpu.memory_space<vmem>>, vector<256x256xbf16>
    %cst_8 = arith.constant dense<0.000000e+00> : vector<8x256xf32>
    %11 = tpu.matmul %9, %10, %cst_8 {dimension_numbers = #tpu.dot_dimension_numbers<[1], [0], [0], [1], [0, 0, 1, 1], [], []>} : vector<8x256xbf16>, vector<256x256xbf16>, vector<8x256xf32> -> vector<8x256xf32>
    %c0_9 = arith.constant 0 : index
    %c0_10 = arith.constant 0 : index
    %12 = vector.load %arg5[%c0_9, %c0_10] : memref<1x256xf32, #tpu.memory_space<vmem>>, vector<1x256xf32>
    %13 = vector.broadcast %12 : vector<1x256xf32> to vector<8x256xf32>
    %14 = arith.addf %11, %13 : vector<8x256xf32>
    %cst_11 = arith.constant 0.000000e+00 : f32
    %15 = vector.broadcast %cst_11 : f32 to vector<8x256xf32>
    %16 = arith.maximumf %14, %15 : vector<8x256xf32>
    %17 = arith.truncf %16 : vector<8x256xf32> to vector<8x256xbf16>
    %c0_12 = arith.constant 0 : index
    %c0_13 = arith.constant 0 : index
    %18 = vector.load %arg6[%c0_12, %c0_13] : memref<256x896xbf16, #tpu.memory_space<vmem>>, vector<256x896xbf16>
    %cst_14 = arith.constant dense<0.000000e+00> : vector<8x896xf32>
    %19 = tpu.matmul %17, %18, %cst_14 {dimension_numbers = #tpu.dot_dimension_numbers<[1], [0], [0], [1], [0, 0, 1, 1], [], []>} : vector<8x256xbf16>, vector<256x896xbf16>, vector<8x896xf32> -> vector<8x896xf32>
    %c0_15 = arith.constant 0 : index
    %c0_16 = arith.constant 0 : index
    %20 = vector.load %arg7[%c0_15, %c0_16] : memref<1x896xf32, #tpu.memory_space<vmem>>, vector<1x896xf32>
    %21 = vector.broadcast %20 : vector<1x896xf32> to vector<8x896xf32>
    %22 = arith.addf %19, %21 : vector<8x896xf32>
    %23 = math.tanh %22 : vector<8x896xf32>
    %c0_17 = arith.constant 0 : index
    %c0_18 = arith.constant 0 : index
    %24 = vector.load %arg8[%c0_17, %c0_18] : memref<8x896xf32, #tpu.memory_space<vmem>>, vector<8x896xf32>
    tpu.vector_store %arg8[%c0_17, %c0_18], %23 {strides = array<i32>} : memref<8x896xf32, #tpu.memory_space<vmem>>, vector<8x896xf32>,
    return
  }
  func.func @transform_0(%arg0: i32) -> (i32, i32) {
    %c0_i32 = arith.constant 0 : i32
    %c0_i32_0 = arith.constant 0 : i32
    return %arg0, %c0_i32 : i32, i32
  }
  func.func @transform_1(%arg0: i32) -> (i32, i32) {
    %c0_i32 = arith.constant 0 : i32
    %c0_i32_0 = arith.constant 0 : i32
    %c0_i32_1 = arith.constant 0 : i32
    return %c0_i32, %c0_i32_0 : i32, i32
  }
  func.func @transform_2(%arg0: i32) -> (i32, i32) {
    %c0_i32 = arith.constant 0 : i32
    %c0_i32_0 = arith.constant 0 : i32
    %c0_i32_1 = arith.constant 0 : i32
    return %c0_i32, %c0_i32_0 : i32, i32
  }
  func.func @transform_3(%arg0: i32) -> (i32, i32) {
    %c0_i32 = arith.constant 0 : i32
    %c0_i32_0 = arith.constant 0 : i32
    %c0_i32_1 = arith.constant 0 : i32
    return %c0_i32, %c0_i32_0 : i32, i32
  }
  func.func @transform_4(%arg0: i32) -> (i32, i32) {
    %c0_i32 = arith.constant 0 : i32
    %c0_i32_0 = arith.constant 0 : i32
    %c0_i32_1 = arith.constant 0 : i32
    return %c0_i32, %c0_i32_0 : i32, i32
  }
  func.func @transform_5(%arg0: i32) -> (i32, i32) {
    %c0_i32 = arith.constant 0 : i32
    %c0_i32_0 = arith.constant 0 : i32
    %c0_i32_1 = arith.constant 0 : i32
    return %c0_i32, %c0_i32_0 : i32, i32
  }
  func.func @transform_6(%arg0: i32) -> (i32, i32) {
    %c0_i32 = arith.constant 0 : i32
    %c0_i32_0 = arith.constant 0 : i32
    %c0_i32_1 = arith.constant 0 : i32
    return %c0_i32, %c0_i32_0 : i32, i32
  }
  func.func @transform_7(%arg0: i32) -> (i32, i32) {
    %c0_i32 = arith.constant 0 : i32
    %c0_i32_0 = arith.constant 0 : i32
    return %arg0, %c0_i32 : i32, i32
  }
}

</mosaic_0001>

<llo_original>
// kernel: generator_forward.1
$region0: #{generator_forward.1}
  #allocation0 [shape = 'u32[]', space=smem, size = 0x4, offset = 0x4, fixed_abs, tag = 'smem constant byte address 0x4 - core index']
  #allocation1 [shape = 'u32[144,128]{1,0:T(1,128)}', space=vmem, size = 0x12000, scoped, tag = 'internal scratch']
  %s0 = inlined_call_operand.hbm [shape: f32[8,64], index: 0, kind: input, shape index: {}]
  %s1 = inlined_call_operand.hbm [shape: bf16[64,256], index: 1, kind: input, shape index: {}]
  %s2 = inlined_call_operand.vmem [shape: f32[1,256], index: 2, kind: input, shape index: {}]
  %s3 = inlined_call_operand.hbm [shape: bf16[256,256], index: 3, kind: input, shape index: {}]
  %s4 = inlined_call_operand.vmem [shape: f32[1,256], index: 4, kind: input, shape index: {}]
  %s5 = inlined_call_operand.hbm [shape: bf16[256,896], index: 5, kind: input, shape index: {}]
  %s6 = inlined_call_operand.vmem [shape: f32[1,896], index: 6, kind: input, shape index: {}]
  %s7 = inlined_call_operand.hbm [shape: f32[8,896], index: 7, kind: output, shape index: {}]
  %s8 = sld [smem:[#allocation0]]
  $region54: #{generator_forward.1} parent=0
    _
  %s10 = ssub.s32 1, %s8
  %s11 = scalar_select 0, %s10, %s8
  $region1: #{generator_forward.1} parent=0
    #allocation2 [shape = 'u8[4096]{0}', space=vmem, size = 0x1000, scoped, tag = 'input window, operand 0, single buffered']
    #allocation3 [shape = 's32[1]{0}', space=sflag, size = 0x4, scoped, tag = 'scoped memory for generator_forward.1']
    #allocation4 [shape = 's32[1]{0}', space=sflag, size = 0x4, scoped, tag = 'scoped memory for generator_forward.1']
    #allocation5 [shape = 'u8[32768]{0}', space=vmem, size = 0x8000, scoped, tag = 'input window, operand 1, single buffered']
    #allocation6 [shape = 's32[1]{0}', space=sflag, size = 0x4, scoped, tag = 'scoped memory for generator_forward.1']
    #allocation7 [shape = 'u8[131072]{0}', space=vmem, size = 0x20000, scoped, tag = 'input window, operand 3, single buffered']
    #allocation8 [shape = 'u8[458752]{0}', space=vmem, size = 0x70000, scoped, tag = 'input window, operand 5, single buffered']
    #allocation9 [shape = 's32[1]{0}', space=sflag, size = 0x4, scoped, tag = 'scoped memory for generator_forward.1']
    #allocation10 [shape = 'u8[28672]{0}', space=vmem, size = 0x7000, scoped, tag = 'output window, operand 0, single buffered']
    %12 = vsyncpa [#allocation3], 0
    %13 = vsyncpa [#allocation6], 0
    %14 = vsyncpa [#allocation9], 0
    %15 = vsyncpa [#allocation4], 0
    // Predicated region
    $region2: #{generator_forward.1} parent=1 // pred_check
      _
    $region3: #{generator_forward.1} parent=1 // pred_check_branch
      %17 = sbr.rel (0) target = $region5
    $region4: #{generator_forward.1} parent=1 // pred_region
      %s19 = ssub.s32 128, 128
      %20 = vsyncadd [#allocation3], %s19
      %s22 = sshll.u32 [#allocation2], 4
      %s23 = int_to_ptr.vmem [resolvable:$true] %s22
      %25 = dma.hbm_to_vmem [thread:$0]  %s0, 128, %s23, [#allocation3]
    $region5: #{generator_forward.1} parent=1 // pred_fallthru
      _
    // Predicated region
    $region6: #{generator_forward.1} parent=1 // pred_check
      _
    $region7: #{generator_forward.1} parent=1 // pred_check_branch
      %27 = sbr.rel (0) target = $region9
    $region8: #{generator_forward.1} parent=1 // pred_region
      %s29 = ssub.s32 1024, 1024
      %30 = vsyncadd [#allocation6], %s29
      %s31 = sshll.u32 [#allocation5], 4
      %s32 = int_to_ptr.vmem [resolvable:$true] %s31
      %37 = dma.hbm_to_vmem [thread:$0]  %s1, 1024, %s32, [#allocation6], 128, 128, 8
    $region9: #{generator_forward.1} parent=1 // pred_fallthru
      _
    // Predicated region
    $region10: #{generator_forward.1} parent=1 // pred_check
      _
    $region11: #{generator_forward.1} parent=1 // pred_check_branch
      %39 = sbr.rel (0) target = $region13
    $region12: #{generator_forward.1} parent=1 // pred_region
      _
    $region13: #{generator_forward.1} parent=1 // pred_fallthru
      _
    // Predicated region
    $region14: #{generator_forward.1} parent=1 // pred_check
      _
    $region15: #{generator_forward.1} parent=1 // pred_check_branch
      %41 = sbr.rel (0) target = $region17
    $region16: #{generator_forward.1} parent=1 // pred_region
      %s43 = ssub.s32 4096, 4096
      %44 = vsyncadd [#allocation6], %s43
      %s45 = sshll.u32 [#allocation7], 4
      %s46 = int_to_ptr.vmem [resolvable:$true] %s45
      %51 = dma.hbm_to_vmem [thread:$0]  %s3, 4096, %s46, [#allocation6], 128, 128, 8
    $region17: #{generator_forward.1} parent=1 // pred_fallthru
      _
    // Predicated region
    $region18: #{generator_forward.1} parent=1 // pred_check
      _
    $region19: #{generator_forward.1} parent=1 // pred_check_branch
      %53 = sbr.rel (0) target = $region21
    $region20: #{generator_forward.1} parent=1 // pred_region
      _
    $region21: #{generator_forward.1} parent=1 // pred_fallthru
      _
    // Predicated region
    $region22: #{generator_forward.1} parent=1 // pred_check
      _
    $region23: #{generator_forward.1} parent=1 // pred_check_branch
      %55 = sbr.rel (0) target = $region25
    $region24: #{generator_forward.1} parent=1 // pred_region
      %s57 = ssub.s32 14336, 14336
      %58 = vsyncadd [#allocation9], %s57
      %s59 = sshll.u32 [#allocation8], 4
      %s60 = int_to_ptr.vmem [resolvable:$true] %s59
      %65 = dma.hbm_to_vmem [thread:$0]  %s5, 14336, %s60, [#allocation9], 448, 448, 28
    $region25: #{generator_forward.1} parent=1 // pred_fallthru
      _
    // Predicated region
    $region26: #{generator_forward.1} parent=1 // pred_check
      _
    $region27: #{generator_forward.1} parent=1 // pred_check_branch
      %67 = sbr.rel (0) target = $region29
    $region28: #{generator_forward.1} parent=1 // pred_region
      _
    $region29: #{generator_forward.1} parent=1 // pred_fallthru
      _
    // Predicated region
    $region30: #{generator_forward.1} parent=1 // pred_check
      _
    $region31: #{generator_forward.1} parent=1 // pred_check_branch
      %69 = sbr.rel (0) target = $region33
    $region32: #{generator_forward.1} parent=1 // pred_region
      %70 = dma.done [#allocation3], 128
    $region33: #{generator_forward.1} parent=1 // pred_fallthru
      _
    // Predicated region
    $region34: #{generator_forward.1} parent=1 // pred_check
      _
    $region35: #{generator_forward.1} parent=1 // pred_check_branch
      %72 = sbr.rel (0) target = $region37
    $region36: #{generator_forward.1} parent=1 // pred_region
      %73 = dma.done [#allocation6], 1024
    $region37: #{generator_forward.1} parent=1 // pred_fallthru
      _
    // Predicated region
    $region38: #{generator_forward.1} parent=1 // pred_check
      _
    $region39: #{generator_forward.1} parent=1 // pred_check_branch
      %75 = sbr.rel (0) target = $region41
    $region40: #{generator_forward.1} parent=1 // pred_region
      %76 = dma.done [#allocation6], 4096
    $region41: #{generator_forward.1} parent=1 // pred_fallthru
      _
    // Predicated region
    $region42: #{generator_forward.1} parent=1 // pred_check
      _
    $region43: #{generator_forward.1} parent=1 // pred_check_branch
      %78 = sbr.rel (0) target = $region45
    $region44: #{generator_forward.1} parent=1 // pred_region
      %79 = dma.done [#allocation9], 14336
    $region45: #{generator_forward.1} parent=1 // pred_fallthru
      _
    %v81 = vld [vmem:[#allocation2] sm:$0xff]
    %v82 = vpack.c.bf16 %v81, %v81
    %v83 = vld [vmem:[#allocation5] sm:$0xff]
    %v84 = vld [vmem:[#allocation5 + $0x8] sm:$0xff]
    %v85 = vld [vmem:[#allocation5 + $0x10] sm:$0xff]
    %v86 = vld [vmem:[#allocation5 + $0x18] sm:$0xff]
    %v87 = vld [vmem:[#allocation5 + $0x20] sm:$0xff]
    %v88 = vld [vmem:[#allocation5 + $0x28] sm:$0xff]
    %v89 = vld [vmem:[#allocation5 + $0x30] sm:$0xff]
    %v90 = vld [vmem:[#allocation5 + $0x38] sm:$0xff]
    %v91 = vld [vmem:[%s2] sm:$0x3]
    %v93 = vlaneseq
    %v94 = vshrl.u32 %v93, 7
    %v95 = vsub.s32 0, %v94
    %v96 = vrot.slane %v91, %v95
    %v97 = vlaneseq
    %v98 = vshrl.u32 %v97, 7
    %v99 = vsub.s32 1, %v98
    %v100 = vrot.slane %v91, %v99
    %v111 = vunpack.c.l.b16 %v83
    %v112 = vunpack.c.h.b16 %v83
    %v113 = vunpack.c.l.b16 %v84
    %v114 = vunpack.c.h.b16 %v84
    %v115 = vunpack.c.l.b16 %v85
    %v116 = vunpack.c.h.b16 %v85
    %v117 = vunpack.c.l.b16 %v86
    %v118 = vunpack.c.h.b16 %v86
    %v119 = vunpack.c.l.b16 %v87
    %v120 = vunpack.c.h.b16 %v87
    %v121 = vunpack.c.l.b16 %v88
    %v122 = vunpack.c.h.b16 %v88
    %v123 = vunpack.c.l.b16 %v89
    %v124 = vunpack.c.h.b16 %v89
    %v125 = vunpack.c.l.b16 %v90
    %v126 = vunpack.c.h.b16 %v90
    %v127 = vpack.c.b16 %v113, %v111
    %v128 = vpack.c.b16 %v114, %v112
    %v129 = vpack.c.b16 %v117, %v115
    %v130 = vpack.c.b16 %v118, %v116
    %v131 = vpack.c.b16 %v121, %v119
    %v132 = vpack.c.b16 %v122, %v120
    %v133 = vpack.c.b16 %v125, %v123
    %v134 = vpack.c.b16 %v126, %v124
    %vm143 = vcmask 523264
    %v145 = vsel %vm143, %v82, 0
    %147 = vmatprep.subr.bf16.mxu0 %v128
    %148 = vmatpush1.bf16.msra.mxu0 %v127
    %149 = vmatprep.subr.bf16.mxu0 %v130
    %150 = vmatpush1.bf16.msra.mxu0 %v129
    %151 = vmatprep.subr.bf16.mxu0 %v132
    %152 = vmatpush1.bf16.msra.mxu0 %v131
    %153 = vmatprep.subr.bf16.mxu0 %v134
    %154 = vmatpush1.bf16.msra.mxu0 %v133
    %155 = vmatprep.subr.bf16.mxu0 0
    %156 = vmatpush1.bf16.msra.mxu0 0
    %157 = vmatprep.subr.bf16.mxu0 0
    %158 = vmatpush1.bf16.msra.mxu0 0
    %159 = vmatprep.subr.bf16.mxu0 0
    %160 = vmatpush1.bf16.msra.mxu0 0
    %161 = vmatprep.subr.bf16.mxu0 0
    %162 = vmatpush1.bf16.msra.mxu0 0
    %163 = vmatprep.subr.bf16.mxu0 0
    %164 = vmatpush1.bf16.msra.mxu0 0
    %165 = vmatprep.subr.bf16.mxu0 0
    %166 = vmatpush1.bf16.msra.mxu0 0
    %167 = vmatprep.subr.bf16.mxu0 0
    %168 = vmatpush1.bf16.msra.mxu0 0
    %169 = vmatprep.subr.bf16.mxu0 0
    %170 = vmatpush1.bf16.msra.mxu0 0
    %171 = vmatprep.subr.bf16.mxu0 0
    %172 = vmatpush1.bf16.msra.mxu0 0
    %173 = vmatprep.subr.bf16.mxu0 0
    %174 = vmatpush1.bf16.msra.mxu0 0
    %175 = vmatprep.subr.bf16.mxu0 0
    %176 = vmatpush1.bf16.msra.mxu0 0
    %177 = vmatprep.subr.bf16.mxu0 0
    %178 = vmatpush1.bf16.msra.mxu0 0
    %179 = vmatprep.mubr.bf16.mxu0 0
    %180 = vmatmul.mubr.bf16.gmra.mrb[0].mxu0 %v145
    %v181 = vpop.f32.mrb[0].mxu0
    %v182 = vadd.f32 %v96, %v181
    %v183 = vpop.f32.mrb[0].mxu0
    %v184 = vadd.f32 %v100, %v183
    %v185 = vpop.f32.mrb[0].mxu0
    %v186 = vpop.f32.mrb[0].mxu0
    %187 = vdwg.mxu0
    %v188 = vmax.f32 %v182, 0.0
    %v189 = vmax.f32 %v184, 0.0
    %v190 = vpack.c.bf16 %v188, %v188
    %v191 = vpack.c.bf16 %v189, %v189
    %v192 = vld [vmem:[#allocation7] sm:$0xff]
    %v193 = vld [vmem:[#allocation7 + $0x8] sm:$0xff]
    %v194 = vld [vmem:[#allocation7 + $0x10] sm:$0xff]
    %v195 = vld [vmem:[#allocation7 + $0x18] sm:$0xff]
    %v196 = vld [vmem:[#allocation7 + $0x20] sm:$0xff]
    %v197 = vld [vmem:[#allocation7 + $0x28] sm:$0xff]
    %v198 = vld [vmem:[#allocation7 + $0x30] sm:$0xff]
    %v199 = vld [vmem:[#allocation7 + $0x38] sm:$0xff]
    %v200 = vld [vmem:[#allocation7 + $0x40] sm:$0xff]
    %v201 = vld [vmem:[#allocation7 + $0x48] sm:$0xff]
    %v202 = vld [vmem:[#allocation7 + $0x50] sm:$0xff]
    %v203 = vld [vmem:[#allocation7 + $0x58] sm:$0xff]
    %v204 = vld [vmem:[#allocation7 + $0x60] sm:$0xff]
    %v205 = vld [vmem:[#allocation7 + $0x68] sm:$0xff]
    %v206 = vld [vmem:[#allocation7 + $0x70] sm:$0xff]
    %v207 = vld [vmem:[#allocation7 + $0x78] sm:$0xff]
    %v208 = vld [vmem:[#allocation7 + $0x80] sm:$0xff]
    %v209 = vld [vmem:[#allocation7 + $0x88] sm:$0xff]
    %v210 = vld [vmem:[#allocation7 + $0x90] sm:$0xff]
    %v211 = vld [vmem:[#allocation7 + $0x98] sm:$0xff]
    %v212 = vld [vmem:[#allocation7 + $0xa0] sm:$0xff]
    %v213 = vld [vmem:[#allocation7 + $0xa8] sm:$0xff]
    %v214 = vld [vmem:[#allocation7 + $0xb0] sm:$0xff]
    %v215 = vld [vmem:[#allocation7 + $0xb8] sm:$0xff]
    %v216 = vld [vmem:[#allocation7 + $0xc0] sm:$0xff]
    %v217 = vld [vmem:[#allocation7 + $0xc8] sm:$0xff]
    %v218 = vld [vmem:[#allocation7 + $0xd0] sm:$0xff]
    %v219 = vld [vmem:[#allocation7 + $0xd8] sm:$0xff]
    %v220 = vld [vmem:[#allocation7 + $0xe0] sm:$0xff]
    %v221 = vld [vmem:[#allocation7 + $0xe8] sm:$0xff]
    %v222 = vld [vmem:[#allocation7 + $0xf0] sm:$0xff]
    %v223 = vld [vmem:[#allocation7 + $0xf8] sm:$0xff]
    %v224 = vld [vmem:[%s4] sm:$0x3]
    %v226 = vlaneseq
    %v227 = vshrl.u32 %v226, 7
    %v228 = vsub.s32 0, %v227
    %v229 = vrot.slane %v224, %v228
    %v230 = vlaneseq
    %v231 = vshrl.u32 %v230, 7
    %v232 = vsub.s32 1, %v231
    %v233 = vrot.slane %v224, %v232
    %v268 = vunpack.c.l.b16 %v192
    %v269 = vunpack.c.h.b16 %v192
    %v270 = vunpack.c.l.b16 %v193
    %v271 = vunpack.c.h.b16 %v193
    %v272 = vunpack.c.l.b16 %v194
    %v273 = vunpack.c.h.b16 %v194
    %v274 = vunpack.c.l.b16 %v195
    %v275 = vunpack.c.h.b16 %v195
    %v276 = vunpack.c.l.b16 %v196
    %v277 = vunpack.c.h.b16 %v196
    %v278 = vunpack.c.l.b16 %v197
    %v279 = vunpack.c.h.b16 %v197
    %v280 = vunpack.c.l.b16 %v198
    %v281 = vunpack.c.h.b16 %v198
    %v282 = vunpack.c.l.b16 %v199
    %v283 = vunpack.c.h.b16 %v199
    %v284 = vunpack.c.l.b16 %v200
    %v285 = vunpack.c.h.b16 %v200
    %v286 = vunpack.c.l.b16 %v201
    %v287 = vunpack.c.h.b16 %v201
    %v288 = vunpack.c.l.b16 %v202
    %v289 = vunpack.c.h.b16 %v202
    %v290 = vunpack.c.l.b16 %v203
    %v291 = vunpack.c.h.b16 %v203
    %v292 = vunpack.c.l.b16 %v204
    %v293 = vunpack.c.h.b16 %v204
    %v294 = vunpack.c.l.b16 %v205
    %v295 = vunpack.c.h.b16 %v205
    %v296 = vunpack.c.l.b16 %v206
    %v297 = vunpack.c.h.b16 %v206
    %v298 = vunpack.c.l.b16 %v207
    %v299 = vunpack.c.h.b16 %v207
    %v300 = vunpack.c.l.b16 %v208
    %v301 = vunpack.c.h.b16 %v208
    %v302 = vunpack.c.l.b16 %v209
    %v303 = vunpack.c.h.b16 %v209
    %v304 = vunpack.c.l.b16 %v210
    %v305 = vunpack.c.h.b16 %v210
    %v306 = vunpack.c.l.b16 %v211
    %v307 = vunpack.c.h.b16 %v211
    %v308 = vunpack.c.l.b16 %v212
    %v309 = vunpack.c.h.b16 %v212
    %v310 = vunpack.c.l.b16 %v213
    %v311 = vunpack.c.h.b16 %v213
    %v312 = vunpack.c.l.b16 %v214
    %v313 = vunpack.c.h.b16 %v214
    %v314 = vunpack.c.l.b16 %v215
    %v315 = vunpack.c.h.b16 %v215
    %v316 = vunpack.c.l.b16 %v216
    %v317 = vunpack.c.h.b16 %v216
    %v318 = vunpack.c.l.b16 %v217
    %v319 = vunpack.c.h.b16 %v217
    %v320 = vunpack.c.l.b16 %v218
    %v321 = vunpack.c.h.b16 %v218
    %v322 = vunpack.c.l.b16 %v219
    %v323 = vunpack.c.h.b16 %v219
    %v324 = vunpack.c.l.b16 %v220
    %v325 = vunpack.c.h.b16 %v220
    %v326 = vunpack.c.l.b16 %v221
    %v327 = vunpack.c.h.b16 %v221
    %v328 = vunpack.c.l.b16 %v222
    %v329 = vunpack.c.h.b16 %v222
    %v330 = vunpack.c.l.b16 %v223
    %v331 = vunpack.c.h.b16 %v223
    %v332 = vpack.c.b16 %v270, %v268
    %v333 = vpack.c.b16 %v271, %v269
    %v334 = vpack.c.b16 %v274, %v272
    %v335 = vpack.c.b16 %v275, %v273
    %v336 = vpack.c.b16 %v278, %v276
    %v337 = vpack.c.b16 %v279, %v277
    %v338 = vpack.c.b16 %v282, %v280
    %v339 = vpack.c.b16 %v283, %v281
    %v340 = vpack.c.b16 %v286, %v284
    %v341 = vpack.c.b16 %v287, %v285
    %v342 = vpack.c.b16 %v290, %v288
    %v343 = vpack.c.b16 %v291, %v289
    %v344 = vpack.c.b16 %v294, %v292
    %v345 = vpack.c.b16 %v295, %v293
    %v346 = vpack.c.b16 %v298, %v296
    %v347 = vpack.c.b16 %v299, %v297
    %v348 = vpack.c.b16 %v302, %v300
    %v349 = vpack.c.b16 %v303, %v301
    %v350 = vpack.c.b16 %v306, %v304
    %v351 = vpack.c.b16 %v307, %v305
    %v352 = vpack.c.b16 %v310, %v308
    %v353 = vpack.c.b16 %v311, %v309
    %v354 = vpack.c.b16 %v314, %v312
    %v355 = vpack.c.b16 %v315, %v313
    %v356 = vpack.c.b16 %v318, %v316
    %v357 = vpack.c.b16 %v319, %v317
    %v358 = vpack.c.b16 %v322, %v320
    %v359 = vpack.c.b16 %v323, %v321
    %v360 = vpack.c.b16 %v326, %v324
    %v361 = vpack.c.b16 %v327, %v325
    %v362 = vpack.c.b16 %v330, %v328
    %v363 = vpack.c.b16 %v331, %v329
    %396 = vmatprep.subr.bf16.mxu0 %v333
    %397 = vmatpush1.bf16.msra.mxu0 %v332
    %398 = vmatprep.subr.bf16.mxu0 %v335
    %399 = vmatpush1.bf16.msra.mxu0 %v334
    %400 = vmatprep.subr.bf16.mxu0 %v337
    %401 = vmatpush1.bf16.msra.mxu0 %v336
    %402 = vmatprep.subr.bf16.mxu0 %v339
    %403 = vmatpush1.bf16.msra.mxu0 %v338
    %404 = vmatprep.subr.bf16.mxu0 %v341
    %405 = vmatpush1.bf16.msra.mxu0 %v340
    %406 = vmatprep.subr.bf16.mxu0 %v343
    %407 = vmatpush1.bf16.msra.mxu0 %v342
    %408 = vmatprep.subr.bf16.mxu0 %v345
    %409 = vmatpush1.bf16.msra.mxu0 %v344
    %410 = vmatprep.subr.bf16.mxu0 %v347
    %411 = vmatpush1.bf16.msra.mxu0 %v346
    %412 = vmatprep.subr.bf16.mxu0 %v349
    %413 = vmatpush1.bf16.msra.mxu0 %v348
    %414 = vmatprep.subr.bf16.mxu0 %v351
    %415 = vmatpush1.bf16.msra.mxu0 %v350
    %416 = vmatprep.subr.bf16.mxu0 %v353
    %417 = vmatpush1.bf16.msra.mxu0 %v352
    %418 = vmatprep.subr.bf16.mxu0 %v355
    %419 = vmatpush1.bf16.msra.mxu0 %v354
    %420 = vmatprep.subr.bf16.mxu0 %v357
    %421 = vmatpush1.bf16.msra.mxu0 %v356
    %422 = vmatprep.subr.bf16.mxu0 %v359
    %423 = vmatpush1.bf16.msra.mxu0 %v358
    %424 = vmatprep.subr.bf16.mxu0 %v361
    %425 = vmatpush1.bf16.msra.mxu0 %v360
    %426 = vmatprep.subr.bf16.mxu0 %v363
    %427 = vmatpush1.bf16.msra.mxu0 %v362
    %428 = vmatprep.mubr.bf16.mxu0 %v191
    %429 = vmatmul.mubr.bf16.gmra.mrb[0].mxu0 %v190
    %v430 = vpop.f32.mrb[0].mxu0
    %v431 = vadd.f32 %v229, %v430
    %v432 = vpop.f32.mrb[0].mxu0
    %v433 = vadd.f32 %v233, %v432
    %v434 = vpop.f32.mrb[0].mxu0
    %v435 = vpop.f32.mrb[0].mxu0
    %436 = vdwg.mxu0
    %v437 = vmax.f32 %v431, 0.0
    %v438 = vmax.f32 %v433, 0.0
    %v439 = vpack.c.bf16 %v437, %v437
    %v440 = vpack.c.bf16 %v438, %v438
    %v441 = vld [vmem:[#allocation8] sm:$0xff]
    %v442 = vld [vmem:[#allocation8 + $0x8] sm:$0xff]
    %v443 = vld [vmem:[#allocation8 + $0x10] sm:$0xff]
    %v444 = vld [vmem:[#allocation8 + $0x18] sm:$0xf]
    %v445 = vld [vmem:[#allocation8 + $0x1c] sm:$0xff]
    %v446 = vld [vmem:[#allocation8 + $0x24] sm:$0xff]
    %v447 = vld [vmem:[#allocation8 + $0x2c] sm:$0xff]
    %v448 = vld [vmem:[#allocation8 + $0x34] sm:$0xf]
    %v449 = vld [vmem:[#allocation8 + $0x38] sm:$0xff]
    %v450 = vld [vmem:[#allocation8 + $0x40] sm:$0xff]
    %v451 = vld [vmem:[#allocation8 + $0x48] sm:$0xff]
    %v452 = vld [vmem:[#allocation8 + $0x50] sm:$0xf]
    %v453 = vld [vmem:[#allocation8 + $0x54] sm:$0xff]
    %v454 = vld [vmem:[#allocation8 + $0x5c] sm:$0xff]
    %v455 = vld [vmem:[#allocation8 + $0x64] sm:$0xff]
    %v456 = vld [vmem:[#allocation8 + $0x6c] sm:$0xf]
    %v457 = vld [vmem:[#allocation8 + $0x70] sm:$0xff]
    %v458 = vld [vmem:[#allocation8 + $0x78] sm:$0xff]
    %v459 = vld [vmem:[#allocation8 + $0x80] sm:$0xff]
    %v460 = vld [vmem:[#allocation8 + $0x88] sm:$0xf]
    %v461 = vld [vmem:[#allocation8 + $0x8c] sm:$0xff]
    %v462 = vld [vmem:[#allocation8 + $0x94] sm:$0xff]
    %v463 = vld [vmem:[#allocation8 + $0x9c] sm:$0xff]
    %v464 = vld [vmem:[#allocation8 + $0xa4] sm:$0xf]
    %v465 = vld [vmem:[#allocation8 + $0xa8] sm:$0xff]
    %v466 = vld [vmem:[#allocation8 + $0xb0] sm:$0xff]
    %v467 = vld [vmem:[#allocation8 + $0xb8] sm:$0xff]
    %v468 = vld [vmem:[#allocation8 + $0xc0] sm:$0xf]
    %v469 = vld [vmem:[#allocation8 + $0xc4] sm:$0xff]
    %v470 = vld [vmem:[#allocation8 + $0xcc] sm:$0xff]
    %v471 = vld [vmem:[#allocation8 + $0xd4] sm:$0xff]
    %v472 = vld [vmem:[#allocation8 + $0xdc] sm:$0xf]
    %v473 = vld [vmem:[#allocation8 + $0xe0] sm:$0xff]
    %v474 = vld [vmem:[#allocation8 + $0xe8] sm:$0xff]
    %v475 = vld [vmem:[#allocation8 + $0xf0] sm:$0xff]
    %v476 = vld [vmem:[#allocation8 + $0xf8] sm:$0xf]
    %v477 = vld [vmem:[#allocation8 + $0xfc] sm:$0xff]
    %v478 = vld [vmem:[#allocation8 + $0x104] sm:$0xff]
    %v479 = vld [vmem:[#allocation8 + $0x10c] sm:$0xff]
    %v480 = vld [vmem:[#allocation8 + $0x114] sm:$0xf]
    %v481 = vld [vmem:[#allocation8 + $0x118] sm:$0xff]
    %v482 = vld [vmem:[#allocation8 + $0x120] sm:$0xff]
    %v483 = vld [vmem:[#allocation8 + $0x128] sm:$0xff]
    %v484 = vld [vmem:[#allocation8 + $0x130] sm:$0xf]
    %v485 = vld [vmem:[#allocation8 + $0x134] sm:$0xff]
    %v486 = vld [vmem:[#allocation8 + $0x13c] sm:$0xff]
    %v487 = vld [vmem:[#allocation8 + $0x144] sm:$0xff]
    %v488 = vld [vmem:[#allocation8 + $0x14c] sm:$0xf]
    %v489 = vld [vmem:[#allocation8 + $0x150] sm:$0xff]
    %v490 = vld [vmem:[#allocation8 + $0x158] sm:$0xff]
    %v491 = vld [vmem:[#allocation8 + $0x160] sm:$0xff]
    %v492 = vld [vmem:[#allocation8 + $0x168] sm:$0xf]
    %v493 = vld [vmem:[#allocation8 + $0x16c] sm:$0xff]
    %v494 = vld [vmem:[#allocation8 + $0x174] sm:$0xff]
    %v495 = vld [vmem:[#allocation8 + $0x17c] sm:$0xff]
    %v496 = vld [vmem:[#allocation8 + $0x184] sm:$0xf]
    %v497 = vld [vmem:[#allocation8 + $0x188] sm:$0xff]
    %v498 = vld [vmem:[#allocation8 + $0x190] sm:$0xff]
    %v499 = vld [vmem:[#allocation8 + $0x198] sm:$0xff]
    %v500 = vld [vmem:[#allocation8 + $0x1a0] sm:$0xf]
    %v501 = vld [vmem:[#allocation8 + $0x1a4] sm:$0xff]
    %v502 = vld [vmem:[#allocation8 + $0x1ac] sm:$0xff]
    %v503 = vld [vmem:[#allocation8 + $0x1b4] sm:$0xff]
    %v504 = vld [vmem:[#allocation8 + $0x1bc] sm:$0xf]
    %v505 = vld [vmem:[#allocation8 + $0x1c0] sm:$0xff]
    %v506 = vld [vmem:[#allocation8 + $0x1c8] sm:$0xff]
    %v507 = vld [vmem:[#allocation8 + $0x1d0] sm:$0xff]
    %v508 = vld [vmem:[#allocation8 + $0x1d8] sm:$0xf]
    %v509 = vld [vmem:[#allocation8 + $0x1dc] sm:$0xff]
    %v510 = vld [vmem:[#allocation8 + $0x1e4] sm:$0xff]
    %v511 = vld [vmem:[#allocation8 + $0x1ec] sm:$0xff]
    %v512 = vld [vmem:[#allocation8 + $0x1f4] sm:$0xf]
    %v513 = vld [vmem:[#allocation8 + $0x1f8] sm:$0xff]
    %v514 = vld [vmem:[#allocation8 + $0x200] sm:$0xff]
    %v515 = vld [vmem:[#allocation8 + $0x208] sm:$0xff]
    %v516 = vld [vmem:[#allocation8 + $0x210] sm:$0xf]
    %v517 = vld [vmem:[#allocation8 + $0x214] sm:$0xff]
    %v518 = vld [vmem:[#allocation8 + $0x21c] sm:$0xff]
    %v519 = vld [vmem:[#allocation8 + $0x224] sm:$0xff]
    %v520 = vld [vmem:[#allocation8 + $0x22c] sm:$0xf]
    %v521 = vld [vmem:[#allocation8 + $0x230] sm:$0xff]
    %v522 = vld [vmem:[#allocation8 + $0x238] sm:$0xff]
    %v523 = vld [vmem:[#allocation8 + $0x240] sm:$0xff]
    %v524 = vld [vmem:[#allocation8 + $0x248] sm:$0xf]
    %v525 = vld [vmem:[#allocation8 + $0x24c] sm:$0xff]
    %v526 = vld [vmem:[#allocation8 + $0x254] sm:$0xff]
    %v527 = vld [vmem:[#allocation8 + $0x25c] sm:$0xff]
    %v528 = vld [vmem:[#allocation8 + $0x264] sm:$0xf]
    %v529 = vld [vmem:[#allocation8 + $0x268] sm:$0xff]
    %v530 = vld [vmem:[#allocation8 + $0x270] sm:$0xff]
    %v531 = vld [vmem:[#allocation8 + $0x278] sm:$0xff]
    %v532 = vld [vmem:[#allocation8 + $0x280] sm:$0xf]
    %v533 = vld [vmem:[#allocation8 + $0x284] sm:$0xff]
    %v534 = vld [vmem:[#allocation8 + $0x28c] sm:$0xff]
    %v535 = vld [vmem:[#allocation8 + $0x294] sm:$0xff]
    %v536 = vld [vmem:[#allocation8 + $0x29c] sm:$0xf]
    %v537 = vld [vmem:[#allocation8 + $0x2a0] sm:$0xff]
    %v538 = vld [vmem:[#allocation8 + $0x2a8] sm:$0xff]
    %v539 = vld [vmem:[#allocation8 + $0x2b0] sm:$0xff]
    %v540 = vld [vmem:[#allocation8 + $0x2b8] sm:$0xf]
    %v541 = vld [vmem:[#allocation8 + $0x2bc] sm:$0xff]
    %v542 = vld [vmem:[#allocation8 + $0x2c4] sm:$0xff]
    %v543 = vld [vmem:[#allocation8 + $0x2cc] sm:$0xff]
    %v544 = vld [vmem:[#allocation8 + $0x2d4] sm:$0xf]
    %v545 = vld [vmem:[#allocation8 + $0x2d8] sm:$0xff]
    %v546 = vld [vmem:[#allocation8 + $0x2e0] sm:$0xff]
    %v547 = vld [vmem:[#allocation8 + $0x2e8] sm:$0xff]
    %v548 = vld [vmem:[#allocation8 + $0x2f0] sm:$0xf]
    %v549 = vld [vmem:[#allocation8 + $0x2f4] sm:$0xff]
    %v550 = vld [vmem:[#allocation8 + $0x2fc] sm:$0xff]
    %v551 = vld [vmem:[#allocation8 + $0x304] sm:$0xff]
    %v552 = vld [vmem:[#allocation8 + $0x30c] sm:$0xf]
    %v553 = vld [vmem:[#allocation8 + $0x310] sm:$0xff]
    %v554 = vld [vmem:[#allocation8 + $0x318] sm:$0xff]
    %v555 = vld [vmem:[#allocation8 + $0x320] sm:$0xff]
    %v556 = vld [vmem:[#allocation8 + $0x328] sm:$0xf]
    %v557 = vld [vmem:[#allocation8 + $0x32c] sm:$0xff]
    %v558 = vld [vmem:[#allocation8 + $0x334] sm:$0xff]
    %v559 = vld [vmem:[#allocation8 + $0x33c] sm:$0xff]
    %v560 = vld [vmem:[#allocation8 + $0x344] sm:$0xf]
    %v561 = vld [vmem:[#allocation8 + $0x348] sm:$0xff]
    %v562 = vld [vmem:[#allocation8 + $0x350] sm:$0xff]
    %v563 = vld [vmem:[#allocation8 + $0x358] sm:$0xff]
    %v564 = vld [vmem:[#allocation8 + $0x360] sm:$0xf]
    %v565 = vld [vmem:[#allocation8 + $0x364] sm:$0xff]
    %v566 = vld [vmem:[#allocation8 + $0x36c] sm:$0xff]
    %v567 = vld [vmem:[#allocation8 + $0x374] sm:$0xff]
    %v568 = vld [vmem:[#allocation8 + $0x37c] sm:$0xf]
    %v569 = vld [vmem:[%s6] sm:$0xff]
    %v571 = vlaneseq
    %v572 = vshrl.u32 %v571, 7
    %v573 = vsub.s32 0, %v572
    %v574 = vrot.slane %v569, %v573
    %v575 = vlaneseq
    %v576 = vshrl.u32 %v575, 7
    %v577 = vsub.s32 1, %v576
    %v578 = vrot.slane %v569, %v577
    %v579 = vlaneseq
    %v580 = vshrl.u32 %v579, 7
    %v581 = vsub.s32 2, %v580
    %v582 = vrot.slane %v569, %v581
    %v583 = vlaneseq
    %v584 = vshrl.u32 %v583, 7
    %v585 = vsub.s32 3, %v584
    %v586 = vrot.slane %v569, %v585
    %v587 = vlaneseq
    %v588 = vshrl.u32 %v587, 7
    %v589 = vsub.s32 4, %v588
    %v590 = vrot.slane %v569, %v589
    %v591 = vlaneseq
    %v592 = vshrl.u32 %v591, 7
    %v593 = vsub.s32 5, %v592
    %v594 = vrot.slane %v569, %v593
    %v595 = vlaneseq
    %v596 = vshrl.u32 %v595, 7
    %v597 = vsub.s32 6, %v596
    %v598 = vrot.slane %v569, %v597
    %v734 = vunpack.c.l.b16 %v441
    %v735 = vunpack.c.h.b16 %v441
    %v736 = vunpack.c.l.b16 %v442
    %v737 = vunpack.c.h.b16 %v442
    %v738 = vunpack.c.l.b16 %v443
    %v739 = vunpack.c.h.b16 %v443
    %v740 = vunpack.c.l.b16 %v444
    %v741 = vunpack.c.l.b16 %v445
    %v742 = vunpack.c.h.b16 %v445
    %v743 = vunpack.c.l.b16 %v446
    %v744 = vunpack.c.h.b16 %v446
    %v745 = vunpack.c.l.b16 %v447
    %v746 = vunpack.c.h.b16 %v447
    %v747 = vunpack.c.l.b16 %v448
    %v748 = vunpack.c.l.b16 %v449
    %v749 = vunpack.c.h.b16 %v449
    %v750 = vunpack.c.l.b16 %v450
    %v751 = vunpack.c.h.b16 %v450
    %v752 = vunpack.c.l.b16 %v451
    %v753 = vunpack.c.h.b16 %v451
    %v754 = vunpack.c.l.b16 %v452
    %v755 = vunpack.c.l.b16 %v453
    %v756 = vunpack.c.h.b16 %v453
    %v757 = vunpack.c.l.b16 %v454
    %v758 = vunpack.c.h.b16 %v454
    %v759 = vunpack.c.l.b16 %v455
    %v760 = vunpack.c.h.b16 %v455
    %v761 = vunpack.c.l.b16 %v456
    %v762 = vunpack.c.l.b16 %v457
    %v763 = vunpack.c.h.b16 %v457
    %v764 = vunpack.c.l.b16 %v458
    %v765 = vunpack.c.h.b16 %v458
    %v766 = vunpack.c.l.b16 %v459
    %v767 = vunpack.c.h.b16 %v459
    %v768 = vunpack.c.l.b16 %v460
    %v769 = vunpack.c.l.b16 %v461
    %v770 = vunpack.c.h.b16 %v461
    %v771 = vunpack.c.l.b16 %v462
    %v772 = vunpack.c.h.b16 %v462
    %v773 = vunpack.c.l.b16 %v463
    %v774 = vunpack.c.h.b16 %v463
    %v775 = vunpack.c.l.b16 %v464
    %v776 = vunpack.c.l.b16 %v465
    %v777 = vunpack.c.h.b16 %v465
    %v778 = vunpack.c.l.b16 %v466
    %v779 = vunpack.c.h.b16 %v466
    %v780 = vunpack.c.l.b16 %v467
    %v781 = vunpack.c.h.b16 %v467
    %v782 = vunpack.c.l.b16 %v468
    %v783 = vunpack.c.l.b16 %v469
    %v784 = vunpack.c.h.b16 %v469
    %v785 = vunpack.c.l.b16 %v470
    %v786 = vunpack.c.h.b16 %v470
    %v787 = vunpack.c.l.b16 %v471
    %v788 = vunpack.c.h.b16 %v471
    %v789 = vunpack.c.l.b16 %v472
    %v790 = vunpack.c.l.b16 %v473
    %v791 = vunpack.c.h.b16 %v473
    %v792 = vunpack.c.l.b16 %v474
    %v793 = vunpack.c.h.b16 %v474
    %v794 = vunpack.c.l.b16 %v475
    %v795 = vunpack.c.h.b16 %v475
    %v796 = vunpack.c.l.b16 %v476
    %v797 = vunpack.c.l.b16 %v477
    %v798 = vunpack.c.h.b16 %v477
    %v799 = vunpack.c.l.b16 %v478
    %v800 = vunpack.c.h.b16 %v478
    %v801 = vunpack.c.l.b16 %v479
    %v802 = vunpack.c.h.b16 %v479
    %v803 = vunpack.c.l.b16 %v480
    %v804 = vunpack.c.l.b16 %v481
    %v805 = vunpack.c.h.b16 %v481
    %v806 = vunpack.c.l.b16 %v482
    %v807 = vunpack.c.h.b16 %v482
    %v808 = vunpack.c.l.b16 %v483
    %v809 = vunpack.c.h.b16 %v483
    %v810 = vunpack.c.l.b16 %v484
    %v811 = vunpack.c.l.b16 %v485
    %v812 = vunpack.c.h.b16 %v485
    %v813 = vunpack.c.l.b16 %v486
    %v814 = vunpack.c.h.b16 %v486
    %v815 = vunpack.c.l.b16 %v487
    %v816 = vunpack.c.h.b16 %v487
    %v817 = vunpack.c.l.b16 %v488
    %v818 = vunpack.c.l.b16 %v489
    %v819 = vunpack.c.h.b16 %v489
    %v820 = vunpack.c.l.b16 %v490
    %v821 = vunpack.c.h.b16 %v490
    %v822 = vunpack.c.l.b16 %v491
    %v823 = vunpack.c.h.b16 %v491
    %v824 = vunpack.c.l.b16 %v492
    %v825 = vunpack.c.l.b16 %v493
    %v826 = vunpack.c.h.b16 %v493
    %v827 = vunpack.c.l.b16 %v494
    %v828 = vunpack.c.h.b16 %v494
    %v829 = vunpack.c.l.b16 %v495
    %v830 = vunpack.c.h.b16 %v495
    %v831 = vunpack.c.l.b16 %v496
    %v832 = vunpack.c.l.b16 %v497
    %v833 = vunpack.c.h.b16 %v497
    %v834 = vunpack.c.l.b16 %v498
    %v835 = vunpack.c.h.b16 %v498
    %v836 = vunpack.c.l.b16 %v499
    %v837 = vunpack.c.h.b16 %v499
    %v838 = vunpack.c.l.b16 %v500
    %v839 = vunpack.c.l.b16 %v501
    %v840 = vunpack.c.h.b16 %v501
    %v841 = vunpack.c.l.b16 %v502
    %v842 = vunpack.c.h.b16 %v502
    %v843 = vunpack.c.l.b16 %v503
    %v844 = vunpack.c.h.b16 %v503
    %v845 = vunpack.c.l.b16 %v504
    %v846 = vunpack.c.l.b16 %v505
    %v847 = vunpack.c.h.b16 %v505
    %v848 = vunpack.c.l.b16 %v506
    %v849 = vunpack.c.h.b16 %v506
    %v850 = vunpack.c.l.b16 %v507
    %v851 = vunpack.c.h.b16 %v507
    %v852 = vunpack.c.l.b16 %v508
    %v853 = vunpack.c.l.b16 %v509
    %v854 = vunpack.c.h.b16 %v509
    %v855 = vunpack.c.l.b16 %v510
    %v856 = vunpack.c.h.b16 %v510
    %v857 = vunpack.c.l.b16 %v511
    %v858 = vunpack.c.h.b16 %v511
    %v859 = vunpack.c.l.b16 %v512
    %v860 = vunpack.c.l.b16 %v513
    %v861 = vunpack.c.h.b16 %v513
    %v862 = vunpack.c.l.b16 %v514
    %v863 = vunpack.c.h.b16 %v514
    %v864 = vunpack.c.l.b16 %v515
    %v865 = vunpack.c.h.b16 %v515
    %v866 = vunpack.c.l.b16 %v516
    %v867 = vunpack.c.l.b16 %v517
    %v868 = vunpack.c.h.b16 %v517
    %v869 = vunpack.c.l.b16 %v518
    %v870 = vunpack.c.h.b16 %v518
    %v871 = vunpack.c.l.b16 %v519
    %v872 = vunpack.c.h.b16 %v519
    %v873 = vunpack.c.l.b16 %v520
    %v874 = vunpack.c.l.b16 %v521
    %v875 = vunpack.c.h.b16 %v521
    %v876 = vunpack.c.l.b16 %v522
    %v877 = vunpack.c.h.b16 %v522
    %v878 = vunpack.c.l.b16 %v523
    %v879 = vunpack.c.h.b16 %v523
    %v880 = vunpack.c.l.b16 %v524
    %v881 = vunpack.c.l.b16 %v525
    %v882 = vunpack.c.h.b16 %v525
    %v883 = vunpack.c.l.b16 %v526
    %v884 = vunpack.c.h.b16 %v526
    %v885 = vunpack.c.l.b16 %v527
    %v886 = vunpack.c.h.b16 %v527
    %v887 = vunpack.c.l.b16 %v528
    %v888 = vunpack.c.l.b16 %v529
    %v889 = vunpack.c.h.b16 %v529
    %v890 = vunpack.c.l.b16 %v530
    %v891 = vunpack.c.h.b16 %v530
    %v892 = vunpack.c.l.b16 %v531
    %v893 = vunpack.c.h.b16 %v531
    %v894 = vunpack.c.l.b16 %v532
    %v895 = vunpack.c.l.b16 %v533
    %v896 = vunpack.c.h.b16 %v533
    %v897 = vunpack.c.l.b16 %v534
    %v898 = vunpack.c.h.b16 %v534
    %v899 = vunpack.c.l.b16 %v535
    %v900 = vunpack.c.h.b16 %v535
    %v901 = vunpack.c.l.b16 %v536
    %v902 = vunpack.c.l.b16 %v537
    %v903 = vunpack.c.h.b16 %v537
    %v904 = vunpack.c.l.b16 %v538
    %v905 = vunpack.c.h.b16 %v538
    %v906 = vunpack.c.l.b16 %v539
    %v907 = vunpack.c.h.b16 %v539
    %v908 = vunpack.c.l.b16 %v540
    %v909 = vunpack.c.l.b16 %v541
    %v910 = vunpack.c.h.b16 %v541
    %v911 = vunpack.c.l.b16 %v542
    %v912 = vunpack.c.h.b16 %v542
    %v913 = vunpack.c.l.b16 %v543
    %v914 = vunpack.c.h.b16 %v543
    %v915 = vunpack.c.l.b16 %v544
    %v916 = vunpack.c.l.b16 %v545
    %v917 = vunpack.c.h.b16 %v545
    %v918 = vunpack.c.l.b16 %v546
    %v919 = vunpack.c.h.b16 %v546
    %v920 = vunpack.c.l.b16 %v547
    %v921 = vunpack.c.h.b16 %v547
    %v922 = vunpack.c.l.b16 %v548
    %v923 = vunpack.c.l.b16 %v549
    %v924 = vunpack.c.h.b16 %v549
    %v925 = vunpack.c.l.b16 %v550
    %v926 = vunpack.c.h.b16 %v550
    %v927 = vunpack.c.l.b16 %v551
    %v928 = vunpack.c.h.b16 %v551
    %v929 = vunpack.c.l.b16 %v552
    %v930 = vunpack.c.l.b16 %v553
    %v931 = vunpack.c.h.b16 %v553
    %v932 = vunpack.c.l.b16 %v554
    %v933 = vunpack.c.h.b16 %v554
    %v934 = vunpack.c.l.b16 %v555
    %v935 = vunpack.c.h.b16 %v555
    %v936 = vunpack.c.l.b16 %v556
    %v937 = vunpack.c.l.b16 %v557
    %v938 = vunpack.c.h.b16 %v557
    %v939 = vunpack.c.l.b16 %v558
    %v940 = vunpack.c.h.b16 %v558
    %v941 = vunpack.c.l.b16 %v559
    %v942 = vunpack.c.h.b16 %v559
    %v943 = vunpack.c.l.b16 %v560
    %v944 = vunpack.c.l.b16 %v561
    %v945 = vunpack.c.h.b16 %v561
    %v946 = vunpack.c.l.b16 %v562
    %v947 = vunpack.c.h.b16 %v562
    %v948 = vunpack.c.l.b16 %v563
    %v949 = vunpack.c.h.b16 %v563
    %v950 = vunpack.c.l.b16 %v564
    %v951 = vunpack.c.l.b16 %v565
    %v952 = vunpack.c.h.b16 %v565
    %v953 = vunpack.c.l.b16 %v566
    %v954 = vunpack.c.h.b16 %v566
    %v955 = vunpack.c.l.b16 %v567
    %v956 = vunpack.c.h.b16 %v567
    %v957 = vunpack.c.l.b16 %v568
    %v958 = vpack.c.b16 %v741, %v734
    %v959 = vpack.c.b16 %v742, %v735
    %v960 = vpack.c.b16 %v743, %v736
    %v961 = vpack.c.b16 %v744, %v737
    %v962 = vpack.c.b16 %v745, %v738
    %v963 = vpack.c.b16 %v746, %v739
    %v964 = vpack.c.b16 %v747, %v740
    %v965 = vpack.c.b16 %v755, %v748
    %v966 = vpack.c.b16 %v756, %v749
    %v967 = vpack.c.b16 %v757, %v750
    %v968 = vpack.c.b16 %v758, %v751
    %v969 = vpack.c.b16 %v759, %v752
    %v970 = vpack.c.b16 %v760, %v753
    %v971 = vpack.c.b16 %v761, %v754
    %v972 = vpack.c.b16 %v769, %v762
    %v973 = vpack.c.b16 %v770, %v763
    %v974 = vpack.c.b16 %v771, %v764
    %v975 = vpack.c.b16 %v772, %v765
    %v976 = vpack.c.b16 %v773, %v766
    %v977 = vpack.c.b16 %v774, %v767
    %v978 = vpack.c.b16 %v775, %v768
    %v979 = vpack.c.b16 %v783, %v776
    %v980 = vpack.c.b16 %v784, %v777
    %v981 = vpack.c.b16 %v785, %v778
    %v982 = vpack.c.b16 %v786, %v779
    %v983 = vpack.c.b16 %v787, %v780
    %v984 = vpack.c.b16 %v788, %v781
    %v985 = vpack.c.b16 %v789, %v782
    %v986 = vpack.c.b16 %v797, %v790
    %v987 = vpack.c.b16 %v798, %v791
    %v988 = vpack.c.b16 %v799, %v792
    %v989 = vpack.c.b16 %v800, %v793
    %v990 = vpack.c.b16 %v801, %v794
    %v991 = vpack.c.b16 %v802, %v795
    %v992 = vpack.c.b16 %v803, %v796
    %v993 = vpack.c.b16 %v811, %v804
    %v994 = vpack.c.b16 %v812, %v805
    %v995 = vpack.c.b16 %v813, %v806
    %v996 = vpack.c.b16 %v814, %v807
    %v997 = vpack.c.b16 %v815, %v808
    %v998 = vpack.c.b16 %v816, %v809
    %v999 = vpack.c.b16 %v817, %v810
    %v1000 = vpack.c.b16 %v825, %v818
    %v1001 = vpack.c.b16 %v826, %v819
    %v1002 = vpack.c.b16 %v827, %v820
    %v1003 = vpack.c.b16 %v828, %v821
    %v1004 = vpack.c.b16 %v829, %v822
    %v1005 = vpack.c.b16 %v830, %v823
    %v1006 = vpack.c.b16 %v831, %v824
    %v1007 = vpack.c.b16 %v839, %v832
    %v1008 = vpack.c.b16 %v840, %v833
    %v1009 = vpack.c.b16 %v841, %v834
    %v1010 = vpack.c.b16 %v842, %v835
    %v1011 = vpack.c.b16 %v843, %v836
    %v1012 = vpack.c.b16 %v844, %v837
    %v1013 = vpack.c.b16 %v845, %v838
    %v1014 = vpack.c.b16 %v853, %v846
    %v1015 = vpack.c.b16 %v854, %v847
    %v1016 = vpack.c.b16 %v855, %v848
    %v1017 = vpack.c.b16 %v856, %v849
    %v1018 = vpack.c.b16 %v857, %v850
    %v1019 = vpack.c.b16 %v858, %v851
    %v1020 = vpack.c.b16 %v859, %v852
    %v1021 = vpack.c.b16 %v867, %v860
    %v1022 = vpack.c.b16 %v868, %v861
    %v1023 = vpack.c.b16 %v869, %v862
    %v1024 = vpack.c.b16 %v870, %v863
    %v1025 = vpack.c.b16 %v871, %v864
    %v1026 = vpack.c.b16 %v872, %v865
    %v1027 = vpack.c.b16 %v873, %v866
    %v1028 = vpack.c.b16 %v881, %v874
    %v1029 = vpack.c.b16 %v882, %v875
    %v1030 = vpack.c.b16 %v883, %v876
    %v1031 = vpack.c.b16 %v884, %v877
    %v1032 = vpack.c.b16 %v885, %v878
    %v1033 = vpack.c.b16 %v886, %v879
    %v1034 = vpack.c.b16 %v887, %v880
    %v1035 = vpack.c.b16 %v895, %v888
    %v1036 = vpack.c.b16 %v896, %v889
    %v1037 = vpack.c.b16 %v897, %v890
    %v1038 = vpack.c.b16 %v898, %v891
    %v1039 = vpack.c.b16 %v899, %v892
    %v1040 = vpack.c.b16 %v900, %v893
    %v1041 = vpack.c.b16 %v901, %v894
    %v1042 = vpack.c.b16 %v909, %v902
    %v1043 = vpack.c.b16 %v910, %v903
    %v1044 = vpack.c.b16 %v911, %v904
    %v1045 = vpack.c.b16 %v912, %v905
    %v1046 = vpack.c.b16 %v913, %v906
    %v1047 = vpack.c.b16 %v914, %v907
    %v1048 = vpack.c.b16 %v915, %v908
    %v1049 = vpack.c.b16 %v923, %v916
    %v1050 = vpack.c.b16 %v924, %v917
    %v1051 = vpack.c.b16 %v925, %v918
    %v1052 = vpack.c.b16 %v926, %v919
    %v1053 = vpack.c.b16 %v927, %v920
    %v1054 = vpack.c.b16 %v928, %v921
    %v1055 = vpack.c.b16 %v929, %v922
    %v1056 = vpack.c.b16 %v937, %v930
    %v1057 = vpack.c.b16 %v938, %v931
    %v1058 = vpack.c.b16 %v939, %v932
    %v1059 = vpack.c.b16 %v940, %v933
    %v1060 = vpack.c.b16 %v941, %v934
    %v1061 = vpack.c.b16 %v942, %v935
    %v1062 = vpack.c.b16 %v943, %v936
    %v1063 = vpack.c.b16 %v951, %v944
    %v1064 = vpack.c.b16 %v952, %v945
    %v1065 = vpack.c.b16 %v953, %v946
    %v1066 = vpack.c.b16 %v954, %v947
    %v1067 = vpack.c.b16 %v955, %v948
    %v1068 = vpack.c.b16 %v956, %v949
    %v1069 = vpack.c.b16 %v957, %v950
    %1182 = vmatprep.subr.bf16.mxu0 %v959
    %1183 = vmatpush1.bf16.msra.mxu0 %v958
    %1184 = vmatprep.subr.bf16.mxu0 %v966
    %1185 = vmatpush1.bf16.msra.mxu0 %v965
    %1186 = vmatprep.subr.bf16.mxu0 %v973
    %1187 = vmatpush1.bf16.msra.mxu0 %v972
    %1188 = vmatprep.subr.bf16.mxu0 %v980
    %1189 = vmatpush1.bf16.msra.mxu0 %v979
    %1190 = vmatprep.subr.bf16.mxu0 %v987
    %1191 = vmatpush1.bf16.msra.mxu0 %v986
    %1192 = vmatprep.subr.bf16.mxu0 %v994
    %1193 = vmatpush1.bf16.msra.mxu0 %v993
    %1194 = vmatprep.subr.bf16.mxu0 %v1001
    %1195 = vmatpush1.bf16.msra.mxu0 %v1000
    %1196 = vmatprep.subr.bf16.mxu0 %v1008
    %1197 = vmatpush1.bf16.msra.mxu0 %v1007
    %1198 = vmatprep.subr.bf16.mxu0 %v1015
    %1199 = vmatpush1.bf16.msra.mxu0 %v1014
    %1200 = vmatprep.subr.bf16.mxu0 %v1022
    %1201 = vmatpush1.bf16.msra.mxu0 %v1021
    %1202 = vmatprep.subr.bf16.mxu0 %v1029
    %1203 = vmatpush1.bf16.msra.mxu0 %v1028
    %1204 = vmatprep.subr.bf16.mxu0 %v1036
    %1205 = vmatpush1.bf16.msra.mxu0 %v1035
    %1206 = vmatprep.subr.bf16.mxu0 %v1043
    %1207 = vmatpush1.bf16.msra.mxu0 %v1042
    %1208 = vmatprep.subr.bf16.mxu0 %v1050
    %1209 = vmatpush1.bf16.msra.mxu0 %v1049
    %1210 = vmatprep.subr.bf16.mxu0 %v1057
    %1211 = vmatpush1.bf16.msra.mxu0 %v1056
    %1212 = vmatprep.subr.bf16.mxu0 %v1064
    %1213 = vmatpush1.bf16.msra.mxu0 %v1063
    %1214 = vmatprep.mubr.bf16.mxu0 %v440
    %1215 = vmatmul.mubr.bf16.gmra.mrb[0].mxu0 %v439
    %v1216 = vpop.f32.mrb[0].mxu0
    %v1217 = vadd.f32 %v574, %v1216
    %v1218 = vpop.f32.mrb[0].mxu0
    %v1219 = vadd.f32 %v578, %v1218
    %v1220 = vpop.f32.mrb[0].mxu0
    %v1221 = vpop.f32.mrb[0].mxu0
    %1222 = vdwg.mxu0
    %1223 = vmatprep.subr.bf16.mxu0 %v961
    %1224 = vmatpush1.bf16.msra.mxu0 %v960
    %1225 = vmatprep.subr.bf16.mxu0 %v968
    %1226 = vmatpush1.bf16.msra.mxu0 %v967
    %1227 = vmatprep.subr.bf16.mxu0 %v975
    %1228 = vmatpush1.bf16.msra.mxu0 %v974
    %1229 = vmatprep.subr.bf16.mxu0 %v982
    %1230 = vmatpush1.bf16.msra.mxu0 %v981
    %1231 = vmatprep.subr.bf16.mxu0 %v989
    %1232 = vmatpush1.bf16.msra.mxu0 %v988
    %1233 = vmatprep.subr.bf16.mxu0 %v996
    %1234 = vmatpush1.bf16.msra.mxu0 %v995
    %1235 = vmatprep.subr.bf16.mxu0 %v1003
    %1236 = vmatpush1.bf16.msra.mxu0 %v1002
    %1237 = vmatprep.subr.bf16.mxu0 %v1010
    %1238 = vmatpush1.bf16.msra.mxu0 %v1009
    %1239 = vmatprep.subr.bf16.mxu0 %v1017
    %1240 = vmatpush1.bf16.msra.mxu0 %v1016
    %1241 = vmatprep.subr.bf16.mxu0 %v1024
    %1242 = vmatpush1.bf16.msra.mxu0 %v1023
    %1243 = vmatprep.subr.bf16.mxu0 %v1031
    %1244 = vmatpush1.bf16.msra.mxu0 %v1030
    %1245 = vmatprep.subr.bf16.mxu0 %v1038
    %1246 = vmatpush1.bf16.msra.mxu0 %v1037
    %1247 = vmatprep.subr.bf16.mxu0 %v1045
    %1248 = vmatpush1.bf16.msra.mxu0 %v1044
    %1249 = vmatprep.subr.bf16.mxu0 %v1052
    %1250 = vmatpush1.bf16.msra.mxu0 %v1051
    %1251 = vmatprep.subr.bf16.mxu0 %v1059
    %1252 = vmatpush1.bf16.msra.mxu0 %v1058
    %1253 = vmatprep.subr.bf16.mxu0 %v1066
    %1254 = vmatpush1.bf16.msra.mxu0 %v1065
    %1255 = vmatprep.mubr.bf16.mxu0 %v440
    %1256 = vmatmul.mubr.bf16.gmra.mrb[0].mxu0 %v439
    %v1257 = vpop.f32.mrb[0].mxu0
    %v1258 = vadd.f32 %v582, %v1257
    %v1259 = vpop.f32.mrb[0].mxu0
    %v1260 = vadd.f32 %v586, %v1259
    %v1261 = vpop.f32.mrb[0].mxu0
    %v1262 = vpop.f32.mrb[0].mxu0
    %1263 = vdwg.mxu0
    %1264 = vmatprep.subr.bf16.mxu0 %v963
    %1265 = vmatpush1.bf16.msra.mxu0 %v962
    %1266 = vmatprep.subr.bf16.mxu0 %v970
    %1267 = vmatpush1.bf16.msra.mxu0 %v969
    %1268 = vmatprep.subr.bf16.mxu0 %v977
    %1269 = vmatpush1.bf16.msra.mxu0 %v976
    %1270 = vmatprep.subr.bf16.mxu0 %v984
    %1271 = vmatpush1.bf16.msra.mxu0 %v983
    %1272 = vmatprep.subr.bf16.mxu0 %v991
    %1273 = vmatpush1.bf16.msra.mxu0 %v990
    %1274 = vmatprep.subr.bf16.mxu0 %v998
    %1275 = vmatpush1.bf16.msra.mxu0 %v997
    %1276 = vmatprep.subr.bf16.mxu0 %v1005
    %1277 = vmatpush1.bf16.msra.mxu0 %v1004
    %1278 = vmatprep.subr.bf16.mxu0 %v1012
    %1279 = vmatpush1.bf16.msra.mxu0 %v1011
    %1280 = vmatprep.subr.bf16.mxu0 %v1019
    %1281 = vmatpush1.bf16.msra.mxu0 %v1018
    %1282 = vmatprep.subr.bf16.mxu0 %v1026
    %1283 = vmatpush1.bf16.msra.mxu0 %v1025
    %1284 = vmatprep.subr.bf16.mxu0 %v1033
    %1285 = vmatpush1.bf16.msra.mxu0 %v1032
    %1286 = vmatprep.subr.bf16.mxu0 %v1040
    %1287 = vmatpush1.bf16.msra.mxu0 %v1039
    %1288 = vmatprep.subr.bf16.mxu0 %v1047
    %1289 = vmatpush1.bf16.msra.mxu0 %v1046
    %1290 = vmatprep.subr.bf16.mxu0 %v1054
    %1291 = vmatpush1.bf16.msra.mxu0 %v1053
    %1292 = vmatprep.subr.bf16.mxu0 %v1061
    %1293 = vmatpush1.bf16.msra.mxu0 %v1060
    %1294 = vmatprep.subr.bf16.mxu0 %v1068
    %1295 = vmatpush1.bf16.msra.mxu0 %v1067
    %1296 = vmatprep.mubr.bf16.mxu0 %v440
    %1297 = vmatmul.mubr.bf16.gmra.mrb[0].mxu0 %v439
    %v1298 = vpop.f32.mrb[0].mxu0
    %v1299 = vadd.f32 %v590, %v1298
    %v1300 = vpop.f32.mrb[0].mxu0
    %v1301 = vadd.f32 %v594, %v1300
    %v1302 = vpop.f32.mrb[0].mxu0
    %v1303 = vpop.f32.mrb[0].mxu0
    %1304 = vdwg.mxu0
    %1305 = vmatprep.subr.bf16.mxu0 0
    %1306 = vmatpush1.bf16.msra.mxu0 %v964
    %1307 = vmatprep.subr.bf16.mxu0 0
    %1308 = vmatpush1.bf16.msra.mxu0 %v971
    %1309 = vmatprep.subr.bf16.mxu0 0
    %1310 = vmatpush1.bf16.msra.mxu0 %v978
    %1311 = vmatprep.subr.bf16.mxu0 0
    %1312 = vmatpush1.bf16.msra.mxu0 %v985
    %1313 = vmatprep.subr.bf16.mxu0 0
    %1314 = vmatpush1.bf16.msra.mxu0 %v992
    %1315 = vmatprep.subr.bf16.mxu0 0
    %1316 = vmatpush1.bf16.msra.mxu0 %v999
    %1317 = vmatprep.subr.bf16.mxu0 0
    %1318 = vmatpush1.bf16.msra.mxu0 %v1006
    %1319 = vmatprep.subr.bf16.mxu0 0
    %1320 = vmatpush1.bf16.msra.mxu0 %v1013
    %1321 = vmatprep.subr.bf16.mxu0 0
    %1322 = vmatpush1.bf16.msra.mxu0 %v1020
    %1323 = vmatprep.subr.bf16.mxu0 0
    %1324 = vmatpush1.bf16.msra.mxu0 %v1027
    %1325 = vmatprep.subr.bf16.mxu0 0
    %1326 = vmatpush1.bf16.msra.mxu0 %v1034
    %1327 = vmatprep.subr.bf16.mxu0 0
    %1328 = vmatpush1.bf16.msra.mxu0 %v1041
    %1329 = vmatprep.subr.bf16.mxu0 0
    %1330 = vmatpush1.bf16.msra.mxu0 %v1048
    %1331 = vmatprep.subr.bf16.mxu0 0
    %1332 = vmatpush1.bf16.msra.mxu0 %v1055
    %1333 = vmatprep.subr.bf16.mxu0 0
    %1334 = vmatpush1.bf16.msra.mxu0 %v1062
    %1335 = vmatprep.subr.bf16.mxu0 0
    %1336 = vmatpush1.bf16.msra.mxu0 %v1069
    %1337 = vmatprep.mubr.bf16.mxu0 %v440
    %1338 = vmatmul.mubr.bf16.gmra.mrb[0].mxu0 %v439
    %v1339 = vpop.f32.mrb[0].mxu0
    %v1340 = vadd.f32 %v598, %v1339
    %v1341 = vpop.f32.mrb[0].mxu0
    %v1342 = vpop.f32.mrb[0].mxu0
    %v1343 = vpop.f32.mrb[0].mxu0
    %1344 = vdwg.mxu0
    %v1345 = vtanh.pop %v1217
    %v1346 = vtanh.pop %v1219
    %v1347 = vtanh.pop %v1258
    %v1348 = vtanh.pop %v1260
    %v1349 = vtanh.pop %v1299
    %v1350 = vtanh.pop %v1301
    %v1351 = vtanh.pop %v1340
    %1352 = vst [vmem:[#allocation10] sm:$0xff] %v1345
    %1353 = vst [vmem:[#allocation10 + $0x8] sm:$0xff] %v1346
    %1354 = vst [vmem:[#allocation10 + $0x10] sm:$0xff] %v1347
    %1355 = vst [vmem:[#allocation10 + $0x18] sm:$0xff] %v1348
    %1356 = vst [vmem:[#allocation10 + $0x20] sm:$0xff] %v1349
    %1357 = vst [vmem:[#allocation10 + $0x28] sm:$0xff] %v1350
    %1358 = vst [vmem:[#allocation10 + $0x30] sm:$0xff] %v1351
    // Predicated region
    $region46: #{generator_forward.1} parent=1 // pred_check
      _
    $region47: #{generator_forward.1} parent=1 // pred_check_branch
      %1360 = sbr.rel (0) target = $region49
    $region48: #{generator_forward.1} parent=1 // pred_region
      %s1362 = ssub.s32 896, 896
      %1363 = vsyncadd [#allocation4], %s1362
      %s1365 = sshll.u32 [#allocation10], 4
      %s1366 = int_to_ptr.vmem [resolvable:$true] %s1365
      %1368 = dma.vmem_to_hbm [thread:$0]  %s1366, 896, %s7, [#allocation4]
    $region49: #{generator_forward.1} parent=1 // pred_fallthru
      _
    // Predicated region
    $region50: #{generator_forward.1} parent=1 // pred_check
      _
    $region51: #{generator_forward.1} parent=1 // pred_check_branch
      %1370 = sbr.rel (0) target = $region53
    $region52: #{generator_forward.1} parent=1 // pred_region
      %1371 = dma.done [#allocation4], 896
    $region53: #{generator_forward.1} parent=1 // pred_fallthru
      _
    %1372 = vsyncpa [#allocation3], 1
    %1373 = vsyncpa [#allocation6], 1
    %1374 = vsyncpa [#allocation9], 1
    %1375 = vsyncpa [#allocation4], 1

</llo_original>
